<compile_context>
chip_gen: v5e
topology: v5e:2x2
jax: 0.10.0
libtpu: 0.0.40
codegen_flags: <defaults>
</compile_context>

<pallas_src>
import jax
import jax.numpy as jnp
from jax.experimental import pallas as pl
from jax.experimental.pallas import tpu as pltpu

N_EMBD = 64
HIDDEN = 4 * N_EMBD  # 256
DROPOUT = 0.2        # unused at inference (identity)

TM_TARGET = 1024     # token tile target (sublane axis), multiple of 8


def _choose_tm(M, target=TM_TARGET):
    """Pick a token tile: large enough to amortize per-step overhead, small
    enough that small workloads don't over-pad, and (when M allows) leaving
    >=2 grid steps so the 'parallel' axis can shard across v7x's 2 TCs."""
    m8 = -(-M // 8) * 8                  # round up to sublane multiple
    if m8 >= 2 * target:
        return target
    half8 = -(-(-(-m8 // 2)) // 8) * 8   # ceil(m8/2) rounded up to multiple of 8
    return max(8, min(target, half8))


def _ffwd_kernel(x_ref, w1_ref, b1_ref, w2_ref, b2_ref, o_ref):
    # x_ref : [tm, C]  f32   (cast to bf16 in-kernel; VALU has slack)
    # w1_ref: [C, H]   bf16     b1_ref: [1, H]  f32
    # w2_ref: [H, C]   bf16     b2_ref: [1, C]  f32
    # o_ref : [tm, C]  f32
    xb = x_ref[...].astype(jnp.bfloat16)
    h = jnp.dot(xb, w1_ref[...], preferred_element_type=jnp.float32)
    h = jnp.maximum(h + b1_ref[...], 0.0)                      # bias + ReLU in f32
    y = jnp.dot(h.astype(jnp.bfloat16), w2_ref[...],
                preferred_element_type=jnp.float32)
    o_ref[...] = (y + b2_ref[...]).astype(o_ref.dtype)         # Dropout(eval) == identity


def feed_forward(x, w1, b1, w2, b2, *, tm_target=TM_TARGET):
    """x: [B, T, C] float32 -> [B, T, C] float32."""
    B, T, C = x.shape
    H = w1.shape[1]
    M = B * T

    tm = _choose_tm(M, tm_target)
    Mp = pl.cdiv(M, tm) * tm

    x2d = x.reshape(M, C)                        # free (contiguous view)
    if Mp != M:
        x2d = jnp.pad(x2d, ((0, Mp - M), (0, 0)))

    # Weights are tiny (~160 KiB) — one-time bf16 cast in the wrapper is negligible.
    w1b = w1.astype(jnp.bfloat16)
    w2b = w2.astype(jnp.bfloat16)
    b1f = b1.astype(jnp.float32).reshape(1, H)
    b2f = b2.astype(jnp.float32).reshape(1, C)

    grid = (Mp // tm,)
    flops = 4 * Mp * C * H                       # two matmuls: 2*Mp*C*H each
    bytes_accessed = (Mp * C * 4                 # x stream (f32)
                      + Mp * C * 4               # out stream (f32)
                      + w1b.size * 2 + w2b.size * 2
                      + b1f.size * 4 + b2f.size * 4)

    out2d = pl.pallas_call(
        _ffwd_kernel,
        out_shape=jax.ShapeDtypeStruct((Mp, C), x.dtype),
        grid_spec=pltpu.PrefetchScalarGridSpec(
            num_scalar_prefetch=0,
            grid=grid,
            in_specs=[
                pl.BlockSpec((tm, C), lambda i: (i, 0)),   # x tile (moves with grid)
                pl.BlockSpec((C, H), lambda i: (0, 0)),    # W1 resident
                pl.BlockSpec((1, H), lambda i: (0, 0)),    # b1 resident
                pl.BlockSpec((H, C), lambda i: (0, 0)),    # W2 resident
                pl.BlockSpec((1, C), lambda i: (0, 0)),    # b2 resident
            ],
            out_specs=pl.BlockSpec((tm, C), lambda i: (i, 0)),
        ),
        compiler_params=pltpu.CompilerParams(
            dimension_semantics=("parallel",),
            vmem_limit_bytes=32 * 1024 * 1024),
        cost_estimate=pl.CostEstimate(
            flops=flops, transcendentals=0, bytes_accessed=bytes_accessed),
    )(x2d, w1b, b1f, w2b, b2f)

    if Mp != M:
        out2d = out2d[:M]
    return out2d.reshape(B, T, C)


def init_params(key, n_embd=N_EMBD, hidden=HIDDEN, dtype=jnp.float32):
    """Deterministic PyTorch-style Linear init: U(-1/sqrt(fan_in), 1/sqrt(fan_in)).
    Weights stored as (in_features, out_features)."""
    k1, k2, k3, k4 = jax.random.split(key, 4)
    bound1 = 1.0 / jnp.sqrt(n_embd)
    bound2 = 1.0 / jnp.sqrt(hidden)
    w1 = jax.random.uniform(k1, (n_embd, hidden), dtype, -bound1, bound1)
    b1 = jax.random.uniform(k2, (1, hidden), dtype, -bound1, bound1)
    w2 = jax.random.uniform(k3, (hidden, n_embd), dtype, -bound2, bound2)
    b2 = jax.random.uniform(k4, (1, n_embd), dtype, -bound2, bound2)
    return w1, b1, w2, b2


if __name__ == "__main__":
    key = jax.random.PRNGKey(0)
    k_params, k_x = jax.random.split(key)

    B, T = 2, 8  # small batch / seq
    x = jax.random.normal(k_x, (B, T, N_EMBD), dtype=jnp.float32)
    w1, b1, w2, b2 = init_params(k_params)

    out = feed_forward(x, w1, b1, w2, b2)
    out = jax.block_until_ready(out)
    assert out.shape == (B, T, N_EMBD)

    # Reference mirroring the kernel's bf16-operand / f32-accumulate math.
    xb = x.reshape(-1, N_EMBD).astype(jnp.bfloat16)
    h_ref = jnp.maximum(
        jnp.dot(xb, w1.astype(jnp.bfloat16), preferred_element_type=jnp.float32) + b1, 0.0)
    ref = (jnp.dot(h_ref.astype(jnp.bfloat16), w2.astype(jnp.bfloat16),
                   preferred_element_type=jnp.float32) + b2).reshape(B, T, N_EMBD)
    assert jnp.allclose(out, ref, atol=1e-2, rtol=1e-2)

    # Looser sanity check against the pure-f32 math of the original module.
    ref_f32 = (jnp.maximum(x.reshape(-1, N_EMBD) @ w1 + b1, 0.0) @ w2 + b2
               ).reshape(B, T, N_EMBD)
    assert jnp.allclose(out, ref_f32, atol=1e-1, rtol=1e-1)

    print("KERNEL_OK")
</pallas_src>

<mosaic_0001>
module attributes {stable_mosaic.version = 11 : i64} {
  func.func @_ffwd_kernel(%arg0: i32, %arg1: memref<8x64xf32, #tpu.memory_space<vmem>>, %arg2: memref<64x256xbf16, #tpu.memory_space<vmem>>, %arg3: memref<1x256xf32, #tpu.memory_space<vmem>>, %arg4: memref<256x64xbf16, #tpu.memory_space<vmem>>, %arg5: memref<1x64xf32, #tpu.memory_space<vmem>>, %arg6: memref<8x64xf32, #tpu.memory_space<vmem>>) attributes {dimension_semantics = [#tpu.dimension_semantics<parallel>], iteration_bounds = array<i64: 2>, scalar_prefetch = 0 : i64, scratch_operands = 0 : i64, tpu.core_type = #tpu.core_type<tc>, window_params = [{transform_indices = @transform_0, window_bounds = array<i64: 8, 64>}, {pipeline_mode = #tpu.pipeline_mode<synchronous>, transform_indices = @transform_1, window_bounds = array<i64: 64, 256>}, {pipeline_mode = #tpu.pipeline_mode<synchronous>, transform_indices = @transform_2, window_bounds = array<i64: 1, 256>}, {pipeline_mode = #tpu.pipeline_mode<synchronous>, transform_indices = @transform_3, window_bounds = array<i64: 256, 64>}, {pipeline_mode = #tpu.pipeline_mode<synchronous>, transform_indices = @transform_4, window_bounds = array<i64: 1, 64>}, {transform_indices = @transform_5, window_bounds = array<i64: 8, 64>}]} {
    %c0 = arith.constant 0 : index
    %c0_0 = arith.constant 0 : index
    %0 = vector.load %arg1[%c0, %c0_0] : memref<8x64xf32, #tpu.memory_space<vmem>>, vector<8x64xf32>
    %1 = arith.truncf %0 : vector<8x64xf32> to vector<8x64xbf16>
    %c0_1 = arith.constant 0 : index
    %c0_2 = arith.constant 0 : index
    %2 = vector.load %arg2[%c0_1, %c0_2] : memref<64x256xbf16, #tpu.memory_space<vmem>>, vector<64x256xbf16>
    %cst = arith.constant dense<0.000000e+00> : vector<8x256xf32>
    %3 = tpu.matmul %1, %2, %cst {dimension_numbers = #tpu.dot_dimension_numbers<[1], [0], [0], [1], [0, 0, 1, 1], [], []>} : vector<8x64xbf16>, vector<64x256xbf16>, vector<8x256xf32> -> vector<8x256xf32>
    %c0_3 = arith.constant 0 : index
    %c0_4 = arith.constant 0 : index
    %4 = vector.load %arg3[%c0_3, %c0_4] : memref<1x256xf32, #tpu.memory_space<vmem>>, vector<1x256xf32>
    %5 = vector.broadcast %4 : vector<1x256xf32> to vector<8x256xf32>
    %6 = arith.addf %3, %5 : vector<8x256xf32>
    %cst_5 = arith.constant 0.000000e+00 : f32
    %7 = vector.broadcast %cst_5 : f32 to vector<8x256xf32>
    %8 = arith.maximumf %6, %7 : vector<8x256xf32>
    %9 = arith.truncf %8 : vector<8x256xf32> to vector<8x256xbf16>
    %c0_6 = arith.constant 0 : index
    %c0_7 = arith.constant 0 : index
    %10 = vector.load %arg4[%c0_6, %c0_7] : memref<256x64xbf16, #tpu.memory_space<vmem>>, vector<256x64xbf16>
    %cst_8 = arith.constant dense<0.000000e+00> : vector<8x64xf32>
    %11 = tpu.matmul %9, %10, %cst_8 {dimension_numbers = #tpu.dot_dimension_numbers<[1], [0], [0], [1], [0, 0, 1, 1], [], []>} : vector<8x256xbf16>, vector<256x64xbf16>, vector<8x64xf32> -> vector<8x64xf32>
    %c0_9 = arith.constant 0 : index
    %c0_10 = arith.constant 0 : index
    %12 = vector.load %arg5[%c0_9, %c0_10] : memref<1x64xf32, #tpu.memory_space<vmem>>, vector<1x64xf32>
    %13 = vector.broadcast %12 : vector<1x64xf32> to vector<8x64xf32>
    %14 = arith.addf %11, %13 : vector<8x64xf32>
    %c0_11 = arith.constant 0 : index
    %c0_12 = arith.constant 0 : index
    %15 = vector.load %arg6[%c0_11, %c0_12] : memref<8x64xf32, #tpu.memory_space<vmem>>, vector<8x64xf32>
    tpu.vector_store %arg6[%c0_11, %c0_12], %14 {strides = array<i32>} : memref<8x64xf32, #tpu.memory_space<vmem>>, vector<8x64xf32>,
    return
  }
  func.func @transform_0(%arg0: i32) -> (i32, i32) {
    %c0_i32 = arith.constant 0 : i32
    %c0_i32_0 = arith.constant 0 : i32
    return %arg0, %c0_i32 : i32, i32
  }
  func.func @transform_1(%arg0: i32) -> (i32, i32) {
    %c0_i32 = arith.constant 0 : i32
    %c0_i32_0 = arith.constant 0 : i32
    %c0_i32_1 = arith.constant 0 : i32
    return %c0_i32, %c0_i32_0 : i32, i32
  }
  func.func @transform_2(%arg0: i32) -> (i32, i32) {
    %c0_i32 = arith.constant 0 : i32
    %c0_i32_0 = arith.constant 0 : i32
    %c0_i32_1 = arith.constant 0 : i32
    return %c0_i32, %c0_i32_0 : i32, i32
  }
  func.func @transform_3(%arg0: i32) -> (i32, i32) {
    %c0_i32 = arith.constant 0 : i32
    %c0_i32_0 = arith.constant 0 : i32
    %c0_i32_1 = arith.constant 0 : i32
    return %c0_i32, %c0_i32_0 : i32, i32
  }
  func.func @transform_4(%arg0: i32) -> (i32, i32) {
    %c0_i32 = arith.constant 0 : i32
    %c0_i32_0 = arith.constant 0 : i32
    %c0_i32_1 = arith.constant 0 : i32
    return %c0_i32, %c0_i32_0 : i32, i32
  }
  func.func @transform_5(%arg0: i32) -> (i32, i32) {
    %c0_i32 = arith.constant 0 : i32
    %c0_i32_0 = arith.constant 0 : i32
    return %arg0, %c0_i32 : i32, i32
  }
}

</mosaic_0001>

<llo_original>
// kernel: tpu_custom_call.1
$region0: #{tpu_custom_call.1}
  #allocation0 [shape = 'u32[]', space=smem, size = 0x4, offset = 0x4, fixed_abs, tag = 'smem constant byte address 0x4 - core index']
  #allocation1 [shape = 'u32[72,128]{1,0:T(1,128)}', space=vmem, size = 0x9000, scoped, tag = 'internal scratch']
  %s0 = inlined_call_operand.vmem [shape: f32[16,64], index: 0, kind: input, shape index: {}]
  %s1 = inlined_call_operand.vmem [shape: bf16[64,256], index: 1, kind: input, shape index: {}]
  %s2 = inlined_call_operand.vmem [shape: f32[1,256], index: 2, kind: input, shape index: {}]
  %s3 = inlined_call_operand.vmem [shape: bf16[256,64], index: 3, kind: input, shape index: {}]
  %s4 = inlined_call_operand.vmem [shape: f32[1,64], index: 4, kind: input, shape index: {}]
  %s5 = inlined_call_operand.hbm [shape: f32[16,64], index: 5, kind: output, shape index: {}]
  %s6 = sld [smem:[#allocation0]]
  $region53: #{tpu_custom_call.1} parent=0
    _
  %s8 = ssub.s32 1, %s6
  %s9 = scalar_select 0, %s8, %s6
  $region1: #{tpu_custom_call.1} parent=0
    #allocation2 [shape = 'u8[8192]{0}', space=vmem, size = 0x2000, scoped, tag = 'output window, operand 0']
    #allocation3 [shape = 's32[2]{0}', space=sflag, size = 0x8, scoped, tag = 'scoped memory for tpu_custom_call.1']
    %10 = vsyncpa [#allocation3], 0
    %s11 = scalar_lea.sflag [#allocation3], 1
    %12 = vsyncpa %s11, 0
    loop: start=0, step=1, limit=4
    $region2: #{tpu_custom_call.1} parent=1 // loop_pre_header
      _
    $region3: #{tpu_custom_call.1} parent=1 // loop_header
      %s14 = sphi 0, %s18
      %p15 = scmp.ge.s32.totalorder %s14, 4
      %s24 = sphi 0, %s26
      %s27 = sphi 0, %s24
      %s28 = sphi 0, %s27
      %s44 = sphi 0, %s28
      %s48 = sphi 0, %s48
      %s50 = sphi 0, %s48
      %s51 = sphi 0, %s50
      %s65 = sphi 0, %s51
      %s69 = sphi 0, %s69
      %s71 = sphi 0, %s69
      %s72 = sphi 0, %s71
      %s86 = sphi 0, %s72
      %s90 = sphi 0, %s90
      %s92 = sphi 0, %s90
      %s93 = sphi 0, %s92
      %s107 = sphi 0, %s93
      %s111 = sphi 0, %s111
      %s113 = sphi 0, %s111
      %s114 = sphi 0, %s113
      %s128 = sphi 0, %s114
      %s134 = sphi 0, %s136
      %s137 = sphi 0, %s134
      %s138 = sphi 0, %s137
      %s154 = sphi 0, %s138
    $region4: #{tpu_custom_call.1} parent=1 // loop_header_branch
      %17 = sbr.rel (%p15) target = $region8
    $region5: #{tpu_custom_call.1} parent=1 // loop_body
      %s19 = ssub.s32 %s14, 1
      %s20 = ssub.s32 %s14, 2
      %s21 = sadd.s32 %s14, 1
      %s22 = ssub.s32 %s14, %s21
      %p23 = scmp.eq.s32.totalorder %s22, 0
      %s25 = sadd.s32 %s24, 1
      %s26 = scalar_select %p23, %s24, %s25
      %p29 = pneg %p23
      %p30 = scmp.eq.s32.totalorder %s14, 1
      %p31 = por %p29, %p30
      %p32 = scmp.ne.s32.totalorder %s24, %s27
      %p33 = scmp.eq.s32.totalorder %s14, 0
      %p34 = por %p32, %p33
      %p35 = scmp.ne.s32.totalorder %s24, %s27
      %p36 = scmp.eq.s32.totalorder %s19, 1
      %p37 = por %p35, %p36
      %p38 = scmp.ne.s32.totalorder %s27, %s28
      %p39 = scmp.eq.s32.totalorder %s19, 0
      %p40 = por %p38, %p39
      %p41 = scmp.ne.s32.totalorder %s27, %s28
      %p42 = scmp.eq.s32.totalorder %s20, 1
      %p43 = por %p41, %p42
      %p45 = scmp.ne.s32.totalorder %s28, %s44
      %p46 = scmp.eq.s32.totalorder %s20, 0
      %p47 = por %p45, %p46
      %s49 = sadd.s32 %s48, 1
      %p52 = scmp.eq.s32.totalorder %s14, 1
      %p53 = scmp.ne.s32.totalorder %s48, %s50
      %p54 = scmp.eq.s32.totalorder %s14, 0
      %p55 = por %p53, %p54
      %p56 = scmp.ne.s32.totalorder %s48, %s50
      %p57 = scmp.eq.s32.totalorder %s19, 1
      %p58 = por %p56, %p57
      %p59 = scmp.ne.s32.totalorder %s50, %s51
      %p60 = scmp.eq.s32.totalorder %s19, 0
      %p61 = por %p59, %p60
      %p62 = scmp.ne.s32.totalorder %s50, %s51
      %p63 = scmp.eq.s32.totalorder %s20, 1
      %p64 = por %p62, %p63
      %p66 = scmp.ne.s32.totalorder %s51, %s65
      %p67 = scmp.eq.s32.totalorder %s20, 0
      %p68 = por %p66, %p67
      %s70 = sadd.s32 %s69, 1
      %p73 = scmp.eq.s32.totalorder %s14, 1
      %p74 = scmp.ne.s32.totalorder %s69, %s71
      %p75 = scmp.eq.s32.totalorder %s14, 0
      %p76 = por %p74, %p75
      %p77 = scmp.ne.s32.totalorder %s69, %s71
      %p78 = scmp.eq.s32.totalorder %s19, 1
      %p79 = por %p77, %p78
      %p80 = scmp.ne.s32.totalorder %s71, %s72
      %p81 = scmp.eq.s32.totalorder %s19, 0
      %p82 = por %p80, %p81
      %p83 = scmp.ne.s32.totalorder %s71, %s72
      %p84 = scmp.eq.s32.totalorder %s20, 1
      %p85 = por %p83, %p84
      %p87 = scmp.ne.s32.totalorder %s72, %s86
      %p88 = scmp.eq.s32.totalorder %s20, 0
      %p89 = por %p87, %p88
      %s91 = sadd.s32 %s90, 1
      %p94 = scmp.eq.s32.totalorder %s14, 1
      %p95 = scmp.ne.s32.totalorder %s90, %s92
      %p96 = scmp.eq.s32.totalorder %s14, 0
      %p97 = por %p95, %p96
      %p98 = scmp.ne.s32.totalorder %s90, %s92
      %p99 = scmp.eq.s32.totalorder %s19, 1
      %p100 = por %p98, %p99
      %p101 = scmp.ne.s32.totalorder %s92, %s93
      %p102 = scmp.eq.s32.totalorder %s19, 0
      %p103 = por %p101, %p102
      %p104 = scmp.ne.s32.totalorder %s92, %s93
      %p105 = scmp.eq.s32.totalorder %s20, 1
      %p106 = por %p104, %p105
      %p108 = scmp.ne.s32.totalorder %s93, %s107
      %p109 = scmp.eq.s32.totalorder %s20, 0
      %p110 = por %p108, %p109
      %s112 = sadd.s32 %s111, 1
      %p115 = scmp.eq.s32.totalorder %s14, 1
      %p116 = scmp.ne.s32.totalorder %s111, %s113
      %p117 = scmp.eq.s32.totalorder %s14, 0
      %p118 = por %p116, %p117
      %p119 = scmp.ne.s32.totalorder %s111, %s113
      %p120 = scmp.eq.s32.totalorder %s19, 1
      %p121 = por %p119, %p120
      %p122 = scmp.ne.s32.totalorder %s113, %s114
      %p123 = scmp.eq.s32.totalorder %s19, 0
      %p124 = por %p122, %p123
      %p125 = scmp.ne.s32.totalorder %s113, %s114
      %p126 = scmp.eq.s32.totalorder %s20, 1
      %p127 = por %p125, %p126
      %p129 = scmp.ne.s32.totalorder %s114, %s128
      %p130 = scmp.eq.s32.totalorder %s20, 0
      %p131 = por %p129, %p130
      %s132 = ssub.s32 %s14, %s21
      %p133 = scmp.eq.s32.totalorder %s132, 0
      %s135 = sadd.s32 %s134, 1
      %s136 = scalar_select %p133, %s134, %s135
      %p139 = pneg %p133
      %p140 = scmp.eq.s32.totalorder %s14, 1
      %p141 = por %p139, %p140
      %p142 = scmp.ne.s32.totalorder %s134, %s137
      %p143 = scmp.eq.s32.totalorder %s14, 0
      %p144 = por %p142, %p143
      %p145 = scmp.ne.s32.totalorder %s134, %s137
      %p146 = scmp.eq.s32.totalorder %s19, 1
      %p147 = por %p145, %p146
      %p148 = scmp.ne.s32.totalorder %s137, %s138
      %p149 = scmp.eq.s32.totalorder %s19, 0
      %p150 = por %p148, %p149
      %p151 = scmp.ne.s32.totalorder %s137, %s138
      %p152 = scmp.eq.s32.totalorder %s20, 1
      %p153 = por %p151, %p152
      %p155 = scmp.ne.s32.totalorder %s138, %s154
      %p156 = scmp.eq.s32.totalorder %s20, 0
      %p157 = por %p155, %p156
      %p158 = scmp.le.s32.totalorder 1, %s14
      %p159 = scmp.lt.s32.totalorder %s14, 3
      %p160 = pnand %p158, %p159
      %p161 = pneg %p160
      // Predicated region
      $region9: #{tpu_custom_call.1} parent=5 // pred_check
        _
      $region10: #{tpu_custom_call.1} parent=5 // pred_check_branch
        %163 = sbr.rel (%p160) target = $region12
      $region11: #{tpu_custom_call.1} parent=5 // pred_region
        %s164 = ssub.s32 %s14, 1
        // Predicated region
        $region13: #{tpu_custom_call.1} parent=11 // pred_check
          %p165 = pneg %p61
        $region14: #{tpu_custom_call.1} parent=11 // pred_check_branch
          %167 = sbr.rel (%p165) target = $region16
        $region15: #{tpu_custom_call.1} parent=11 // pred_region
          _
        $region16: #{tpu_custom_call.1} parent=11 // pred_fallthru
          _
        // Predicated region
        $region17: #{tpu_custom_call.1} parent=11 // pred_check
          %p168 = pneg %p82
        $region18: #{tpu_custom_call.1} parent=11 // pred_check_branch
          %170 = sbr.rel (%p168) target = $region20
        $region19: #{tpu_custom_call.1} parent=11 // pred_region
          _
        $region20: #{tpu_custom_call.1} parent=11 // pred_fallthru
          _
        // Predicated region
        $region21: #{tpu_custom_call.1} parent=11 // pred_check
          %p171 = pneg %p103
        $region22: #{tpu_custom_call.1} parent=11 // pred_check_branch
          %173 = sbr.rel (%p171) target = $region24
        $region23: #{tpu_custom_call.1} parent=11 // pred_region
          _
        $region24: #{tpu_custom_call.1} parent=11 // pred_fallthru
          _
        // Predicated region
        $region25: #{tpu_custom_call.1} parent=11 // pred_check
          %p174 = pneg %p124
        $region26: #{tpu_custom_call.1} parent=11 // pred_check_branch
          %176 = sbr.rel (%p174) target = $region28
        $region27: #{tpu_custom_call.1} parent=11 // pred_region
          _
        $region28: #{tpu_custom_call.1} parent=11 // pred_fallthru
          _
      $region12: #{tpu_custom_call.1} parent=5 // pred_fallthru
        _
      %p177 = scmp.lt.s32.totalorder %s14, 2
      // Predicated region
      $region29: #{tpu_custom_call.1} parent=5 // pred_check
        %p178 = pneg %p177
      $region30: #{tpu_custom_call.1} parent=5 // pred_check_branch
        %180 = sbr.rel (%p178) target = $region32
      $region31: #{tpu_custom_call.1} parent=5 // pred_region
        // Predicated region
        $region33: #{tpu_custom_call.1} parent=31 // pred_check
          %p181 = pneg %p34
        $region34: #{tpu_custom_call.1} parent=31 // pred_check_branch
          %183 = sbr.rel (%p181) target = $region36
        $region35: #{tpu_custom_call.1} parent=31 // pred_region
          %p184 = scmp.lt.s32.totalorder %s14, 1
          %s185 = scalar_select %p184, %s14, 1
          %s186 = smul.addr %s185, 8
          %s187 = scalar_lea.vmem %s0, %s186
        $region36: #{tpu_custom_call.1} parent=31 // pred_fallthru
          _
      $region32: #{tpu_custom_call.1} parent=5 // pred_fallthru
        _
      %p188 = scmp.le.s32.totalorder 1, %s14
      %p189 = scmp.lt.s32.totalorder %s14, 3
      %p190 = pnand %p188, %p189
      %p191 = pneg %p190
      // Predicated region
      $region37: #{tpu_custom_call.1} parent=5 // pred_check
        _
      $region38: #{tpu_custom_call.1} parent=5 // pred_check_branch
        %193 = sbr.rel (%p190) target = $region40
      $region39: #{tpu_custom_call.1} parent=5 // pred_region
        %s194 = ssub.s32 %s14, 1
        %p195 = scmp.lt.s32.totalorder %s19, 1
        %s196 = scalar_select %p195, %s19, 1
        %s197 = smul.addr %s196, 8
        %s198 = scalar_lea.vmem %s0, %s197
        %p199 = pneg %p40
        %p200 = pneg %p37
        %p201 = pneg %p61
        %p202 = pneg %p58
        %p203 = pneg %p82
        %p204 = pneg %p79
        %p205 = pneg %p103
        %p206 = pneg %p100
        %p207 = pneg %p124
        %p208 = pneg %p121
        %p209 = pneg %p150
        %p210 = pneg %p147
        %s211 = sand.u32 %s137, 1
        %s212 = scalar_lea.sflag [#allocation3], %s211
        %s213 = sand.u32 %s137, 1
        %s214 = smul.addr %s213, 8
        %s215 = scalar_lea.vmem [#allocation2], %s214
        %p216 = scmp.lt.s32.totalorder %s19, 1
        %s217 = scalar_select %p216, %s19, 1
        %s218 = smul.addr %s217, 8
        %s219 = scalar_lea.vmem %s0, %s218
        %v221 = vld [vmem:[%s219] sm:$0xff]
        %v222 = vpack.c.bf16 %v221, %v221
        %v223 = vld [vmem:[%s1] sm:$0xff]
        %v224 = vld [vmem:[%s1 + $0x8] sm:$0xff]
        %v225 = vld [vmem:[%s1 + $0x10] sm:$0xff]
        %v226 = vld [vmem:[%s1 + $0x18] sm:$0xff]
        %v227 = vld [vmem:[%s1 + $0x20] sm:$0xff]
        %v228 = vld [vmem:[%s1 + $0x28] sm:$0xff]
        %v229 = vld [vmem:[%s1 + $0x30] sm:$0xff]
        %v230 = vld [vmem:[%s1 + $0x38] sm:$0xff]
        %v231 = vld [vmem:[%s2] sm:$0x3]
        %v233 = vperm.slane %v231, 0
        %v234 = vperm.slane %v231, 1
        %v245 = vunpack.c.l.b16 %v223
        %v246 = vunpack.c.h.b16 %v223
        %v247 = vunpack.c.l.b16 %v224
        %v248 = vunpack.c.h.b16 %v224
        %v249 = vunpack.c.l.b16 %v225
        %v250 = vunpack.c.h.b16 %v225
        %v251 = vunpack.c.l.b16 %v226
        %v252 = vunpack.c.h.b16 %v226
        %v253 = vunpack.c.l.b16 %v227
        %v254 = vunpack.c.h.b16 %v227
        %v255 = vunpack.c.l.b16 %v228
        %v256 = vunpack.c.h.b16 %v228
        %v257 = vunpack.c.l.b16 %v229
        %v258 = vunpack.c.h.b16 %v229
        %v259 = vunpack.c.l.b16 %v230
        %v260 = vunpack.c.h.b16 %v230
        %v261 = vpack.c.b16 %v247, %v245
        %v262 = vpack.c.b16 %v248, %v246
        %v263 = vpack.c.b16 %v251, %v249
        %v264 = vpack.c.b16 %v252, %v250
        %v265 = vpack.c.b16 %v255, %v253
        %v266 = vpack.c.b16 %v256, %v254
        %v267 = vpack.c.b16 %v259, %v257
        %v268 = vpack.c.b16 %v260, %v258
        %vm277 = vcmask 523264
        %v279 = vsel %vm277, %v222, 0
        %281 = vmatpush.bf16.msra.mxu0 0
        %282 = vmatpush.bf16.msra.mxu0 0
        %283 = vmatpush.bf16.msra.mxu0 0
        %284 = vmatpush.bf16.msra.mxu0 0
        %285 = vmatpush.bf16.msra.mxu0 %v267
        %286 = vmatpush.bf16.msra.mxu0 %v265
        %287 = vmatpush.bf16.msra.mxu0 %v263
        %288 = vmatpush.bf16.msra.mxu0 %v261
        %289 = vmatmul.bf16.gmra.mxu0 %v279
        %v290 = vpop.f32.mrf.mxu0
        %v291 = vadd.f32 %v233, %v290
        %v292 = vpop.f32.mrf.mxu0
        %293 = vdwg.mxu0
        %294 = vmatpush.bf16.msra.mxu0 0
        %295 = vmatpush.bf16.msra.mxu0 0
        %296 = vmatpush.bf16.msra.mxu0 0
        %297 = vmatpush.bf16.msra.mxu0 0
        %298 = vmatpush.bf16.msra.mxu0 %v268
        %299 = vmatpush.bf16.msra.mxu0 %v266
        %300 = vmatpush.bf16.msra.mxu0 %v264
        %301 = vmatpush.bf16.msra.mxu0 %v262
        %302 = vmatmul.bf16.gmra.mxu0 %v279
        %v303 = vpop.f32.mrf.mxu0
        %v304 = vadd.f32 %v234, %v303
        %v305 = vpop.f32.mrf.mxu0
        %306 = vdwg.mxu0
        %v307 = vmax.f32 %v291, 0.0
        %v308 = vmax.f32 %v304, 0.0
        %v309 = vpack.c.bf16 %v307, %v307
        %v310 = vpack.c.bf16 %v308, %v308
        %v311 = vld [vmem:[%s3] sm:$0xf]
        %v312 = vld [vmem:[%s3 + $0x4] sm:$0xf]
        %v313 = vld [vmem:[%s3 + $0x8] sm:$0xf]
        %v314 = vld [vmem:[%s3 + $0xc] sm:$0xf]
        %v315 = vld [vmem:[%s3 + $0x10] sm:$0xf]
        %v316 = vld [vmem:[%s3 + $0x14] sm:$0xf]
        %v317 = vld [vmem:[%s3 + $0x18] sm:$0xf]
        %v318 = vld [vmem:[%s3 + $0x1c] sm:$0xf]
        %v319 = vld [vmem:[%s3 + $0x20] sm:$0xf]
        %v320 = vld [vmem:[%s3 + $0x24] sm:$0xf]
        %v321 = vld [vmem:[%s3 + $0x28] sm:$0xf]
        %v322 = vld [vmem:[%s3 + $0x2c] sm:$0xf]
        %v323 = vld [vmem:[%s3 + $0x30] sm:$0xf]
        %v324 = vld [vmem:[%s3 + $0x34] sm:$0xf]
        %v325 = vld [vmem:[%s3 + $0x38] sm:$0xf]
        %v326 = vld [vmem:[%s3 + $0x3c] sm:$0xf]
        %v327 = vld [vmem:[%s3 + $0x40] sm:$0xf]
        %v328 = vld [vmem:[%s3 + $0x44] sm:$0xf]
        %v329 = vld [vmem:[%s3 + $0x48] sm:$0xf]
        %v330 = vld [vmem:[%s3 + $0x4c] sm:$0xf]
        %v331 = vld [vmem:[%s3 + $0x50] sm:$0xf]
        %v332 = vld [vmem:[%s3 + $0x54] sm:$0xf]
        %v333 = vld [vmem:[%s3 + $0x58] sm:$0xf]
        %v334 = vld [vmem:[%s3 + $0x5c] sm:$0xf]
        %v335 = vld [vmem:[%s3 + $0x60] sm:$0xf]
        %v336 = vld [vmem:[%s3 + $0x64] sm:$0xf]
        %v337 = vld [vmem:[%s3 + $0x68] sm:$0xf]
        %v338 = vld [vmem:[%s3 + $0x6c] sm:$0xf]
        %v339 = vld [vmem:[%s3 + $0x70] sm:$0xf]
        %v340 = vld [vmem:[%s3 + $0x74] sm:$0xf]
        %v341 = vld [vmem:[%s3 + $0x78] sm:$0xf]
        %v342 = vld [vmem:[%s3 + $0x7c] sm:$0xf]
        %v343 = vld [vmem:[%s4] sm:$0x1]
        %v345 = vperm.slane %v343, 0
        %v379 = vunpack.c.l.b16 %v311
        %v380 = vunpack.c.l.b16 %v312
        %v381 = vunpack.c.l.b16 %v313
        %v382 = vunpack.c.l.b16 %v314
        %v383 = vunpack.c.l.b16 %v315
        %v384 = vunpack.c.l.b16 %v316
        %v385 = vunpack.c.l.b16 %v317
        %v386 = vunpack.c.l.b16 %v318
        %v387 = vunpack.c.l.b16 %v319
        %v388 = vunpack.c.l.b16 %v320
        %v389 = vunpack.c.l.b16 %v321
        %v390 = vunpack.c.l.b16 %v322
        %v391 = vunpack.c.l.b16 %v323
        %v392 = vunpack.c.l.b16 %v324
        %v393 = vunpack.c.l.b16 %v325
        %v394 = vunpack.c.l.b16 %v326
        %v395 = vunpack.c.l.b16 %v327
        %v396 = vunpack.c.l.b16 %v328
        %v397 = vunpack.c.l.b16 %v329
        %v398 = vunpack.c.l.b16 %v330
        %v399 = vunpack.c.l.b16 %v331
        %v400 = vunpack.c.l.b16 %v332
        %v401 = vunpack.c.l.b16 %v333
        %v402 = vunpack.c.l.b16 %v334
        %v403 = vunpack.c.l.b16 %v335
        %v404 = vunpack.c.l.b16 %v336
        %v405 = vunpack.c.l.b16 %v337
        %v406 = vunpack.c.l.b16 %v338
        %v407 = vunpack.c.l.b16 %v339
        %v408 = vunpack.c.l.b16 %v340
        %v409 = vunpack.c.l.b16 %v341
        %v410 = vunpack.c.l.b16 %v342
        %v411 = vpack.c.b16 %v380, %v379
        %v412 = vpack.c.b16 %v382, %v381
        %v413 = vpack.c.b16 %v384, %v383
        %v414 = vpack.c.b16 %v386, %v385
        %v415 = vpack.c.b16 %v388, %v387
        %v416 = vpack.c.b16 %v390, %v389
        %v417 = vpack.c.b16 %v392, %v391
        %v418 = vpack.c.b16 %v394, %v393
        %v419 = vpack.c.b16 %v396, %v395
        %v420 = vpack.c.b16 %v398, %v397
        %v421 = vpack.c.b16 %v400, %v399
        %v422 = vpack.c.b16 %v402, %v401
        %v423 = vpack.c.b16 %v404, %v403
        %v424 = vpack.c.b16 %v406, %v405
        %v425 = vpack.c.b16 %v408, %v407
        %v426 = vpack.c.b16 %v410, %v409
        %443 = vmatpush.bf16.msra.mxu0 %v418
        %444 = vmatpush.bf16.msra.mxu0 %v417
        %445 = vmatpush.bf16.msra.mxu0 %v416
        %446 = vmatpush.bf16.msra.mxu0 %v415
        %447 = vmatpush.bf16.msra.mxu0 %v414
        %448 = vmatpush.bf16.msra.mxu0 %v413
        %449 = vmatpush.bf16.msra.mxu0 %v412
        %450 = vmatpush.bf16.msra.mxu0 %v411
        %451 = vmatmul.bf16.gmra.mxu0 %v309
        %v452 = vpop.f32.mrf.mxu0
        %v453 = vadd.f32 %v345, %v452
        %v454 = vpop.f32.mrf.mxu0
        %455 = vdwg.mxu0
        %456 = vmatpush.bf16.msra.mxu0 %v426
        %457 = vmatpush.bf16.msra.mxu0 %v425
        %458 = vmatpush.bf16.msra.mxu0 %v424
        %459 = vmatpush.bf16.msra.mxu0 %v423
        %460 = vmatpush.bf16.msra.mxu0 %v422
        %461 = vmatpush.bf16.msra.mxu0 %v421
        %462 = vmatpush.bf16.msra.mxu0 %v420
        %463 = vmatpush.bf16.msra.mxu0 %v419
        %464 = vmatmul.bf16.gmra.mxu0 %v310
        %v465 = vpop.f32.mrf.mxu0
        %v466 = vadd.f32 %v453, %v465
        %v467 = vpop.f32.mrf.mxu0
        %468 = vdwg.mxu0
        %469 = vst.msk [vmem:[%s215] sm:$0xff] %vm277, %v466
        %s470 = sand.u32 %s137, 1
        %s471 = scalar_lea.sflag [#allocation3], %s470
        %s472 = sand.u32 %s137, 1
        %s473 = smul.addr %s472, 8
        %s474 = scalar_lea.vmem [#allocation2], %s473
        // Predicated region
        $region41: #{tpu_custom_call.1} parent=39 // pred_check
          %p475 = pneg %p147
        $region42: #{tpu_custom_call.1} parent=39 // pred_check_branch
          %477 = sbr.rel (%p475) target = $region44
        $region43: #{tpu_custom_call.1} parent=39 // pred_region
          %479 = vsyncadd %s471, 0
          %s480 = smul.addr %s19, 8
          %s481 = scalar_lea.hbm %s5, %s480
          %s483 = sshll.u32 %s474, 4
          %s484 = int_to_ptr.vmem [resolvable:$true] %s483
          %s485 = sshll.u32 %s481, 4
          %s486 = int_to_ptr.hbm [resolvable:$true] %s485
          %488 = dma.vmem_to_hbm [thread:$0]  %s484, 128, %s486, %s471
        $region44: #{tpu_custom_call.1} parent=39 // pred_fallthru
          _
      $region40: #{tpu_custom_call.1} parent=5 // pred_fallthru
        _
      %p489 = scmp.le.s32.totalorder 2, %s14
      // Predicated region
      $region45: #{tpu_custom_call.1} parent=5 // pred_check
        %p490 = pneg %p489
      $region46: #{tpu_custom_call.1} parent=5 // pred_check_branch
        %492 = sbr.rel (%p490) target = $region48
      $region47: #{tpu_custom_call.1} parent=5 // pred_region
        %s493 = ssub.s32 %s14, 2
        // Predicated region
        $region49: #{tpu_custom_call.1} parent=47 // pred_check
          %p494 = pneg %p153
        $region50: #{tpu_custom_call.1} parent=47 // pred_check_branch
          %496 = sbr.rel (%p494) target = $region52
        $region51: #{tpu_custom_call.1} parent=47 // pred_region
          %s497 = sand.u32 %s138, 1
          %s498 = scalar_lea.sflag [#allocation3], %s497
          %s499 = sand.u32 %s138, 1
          %s500 = smul.addr %s499, 8
          %s501 = scalar_lea.vmem [#allocation2], %s500
          %503 = dma.done %s498, 128
        $region52: #{tpu_custom_call.1} parent=47 // pred_fallthru
          _
      $region48: #{tpu_custom_call.1} parent=5 // pred_fallthru
        _
    $region6: #{tpu_custom_call.1} parent=1 // loop_footer
      %s18 = sadd.s32 1, %s14
    $region7: #{tpu_custom_call.1} parent=1 // loop_footer_branch
      %13 = sbr.rel target = $region3
    $region8: #{tpu_custom_call.1} parent=1 // loop_exit
      _
    %504 = vsyncpa [#allocation3], 1
    %s505 = scalar_lea.sflag [#allocation3], 1
    %506 = vsyncpa %s505, 1

</llo_original>
